<compile_context>
chip_gen: v7x
topology: tpu7x:2x2x1
jax: 0.10.0
libtpu: 0.0.40
codegen_flags: <defaults>
</compile_context>

<pallas_src>
import numpy as np
import jax
import jax.numpy as jnp
from jax.experimental import pallas as pl
from jax.experimental.pallas import tpu as pltpu


def gen_pred_dict(id, timestamp, box, arrow, points, score, label):
    if len(label) == 0:
        score = [-2333]
        label = [-1]
    return {'info': id, 'timestamp': timestamp, 'boxes_3d': box.tolist(),
            'arrows': arrow.tolist(), 'scores_3d': score, 'labels_3d': label,
            'points': points.tolist()}


def _round_up(a, b):
    return ((a + b - 1) // b) * b


def _late_fusion_kernel(rot_ref, t_ref, rng_ref, nvalid_ref,
                        corners_ref, ry_ref,
                        corners_out, arrows_out, mask_out):
    """Lane-dense late-fusion box post-processing.

    corners_ref : (3, 8, TN) f32 VMEM   (coord, corner, box) lidar-frame corners
    ry_ref      : (1, TN)    f32 VMEM   yaw per box
    corners_out : (3, 8, TN) f32 VMEM   transformed corners
    arrows_out  : (6, TN)    f32 VMEM   rows = [cx, cy, cz, ax, ay, az] (transformed)
    mask_out    : (1, TN)    i32 VMEM   keep flag per box (0 for padded lanes)
    rot/t/rng/nvalid : flat 1-D SMEM scalars (9,), (3,), (6,), (1,)
    """
    x = corners_ref[0]                                   # (8, TN) lidar-frame corner x
    y = corners_ref[1]
    z = corners_ref[2]

    # box_centers_lidar = box_lidar.mean(axis=corners)   (sublane reduction -> XLU)
    cx = jnp.mean(x, axis=0, keepdims=True)              # (1, TN)
    cy = jnp.mean(y, axis=0, keepdims=True)
    cz = jnp.mean(z, axis=0, keepdims=True)

    # arrow_ends_lidar = get_arrow_end(centers, ry) = center + [cos(ry), sin(ry), 0]
    # TODO(synk): get_arrow_end source not provided; assuming the standard unit yaw arrow.
    ry = ry_ref[...]                                     # (1, TN)
    ax = cx + jnp.cos(ry)
    ay = cy + jnp.sin(ry)
    az = cz

    # trans(p) = R @ p + t as 9 SMEM-scalar broadcast multiply-adds on the VPU.
    # (contraction dim is 3 — deliberately NOT restructured as an MXU matmul)
    # TODO(synk): `trans` is an arbitrary callable in the reference; assumed rigid R,t.
    r = [rot_ref[k] for k in range(9)]
    t = [t_ref[k] for k in range(3)]

    tcent, tarrow = [], []
    keep = None
    for e in range(3):
        te = r[3 * e] * x + r[3 * e + 1] * y + r[3 * e + 2] * z + t[e]      # (8, TN)
        corners_out[e] = te                              # full-vreg, unmasked lane-dense store
        inside_e = (te >= rng_ref[e]) & (te <= rng_ref[3 + e])
        keep = inside_e if keep is None else (keep & inside_e)
        tcent.append(r[3 * e] * cx + r[3 * e + 1] * cy + r[3 * e + 2] * cz + t[e])
        tarrow.append(r[3 * e] * ax + r[3 * e + 1] * ay + r[3 * e + 2] * az + t[e])

    # single full-tile store for the whole arrow slab instead of six 1-lane sliced writes
    arrows_out[...] = jnp.concatenate(tcent + tarrow, axis=0)               # (6, TN)

    # pred_filter: keep box if ANY transformed corner lies inside pc_range.
    # TODO(synk): pred_filter is a callable in the reference; range-check semantics assumed.
    keep_any = jnp.any(keep, axis=0, keepdims=True)                         # (1, TN)

    tn = mask_out.shape[-1]
    lane = jax.lax.broadcasted_iota(jnp.int32, (1, tn), 1) + pl.program_id(0) * tn
    mask_out[...] = (keep_any & (lane < nvalid_ref[0])).astype(jnp.int32)


def _pallas_late_fusion(rot9, t3, rng6, nvalid, corners_cm, ry_row, *, tile_n):
    npad = corners_cm.shape[-1]
    grid = (npad // tile_n,)
    smem = pl.BlockSpec(memory_space=pltpu.MemorySpace.SMEM)
    return pl.pallas_call(
        _late_fusion_kernel,
        out_shape=(
            jax.ShapeDtypeStruct((3, 8, npad), jnp.float32),   # transformed corners
            jax.ShapeDtypeStruct((6, npad), jnp.float32),      # [center_xyz, arrow_xyz]
            jax.ShapeDtypeStruct((1, npad), jnp.int32),        # keep mask
        ),
        grid_spec=pltpu.PrefetchScalarGridSpec(
            num_scalar_prefetch=0,
            grid=grid,
            in_specs=[smem, smem, smem, smem,
                      pl.BlockSpec((3, 8, tile_n), lambda i: (0, 0, i)),
                      pl.BlockSpec((1, tile_n), lambda i: (0, i))],
            out_specs=(pl.BlockSpec((3, 8, tile_n), lambda i: (0, 0, i)),
                       pl.BlockSpec((6, tile_n), lambda i: (0, i)),
                       pl.BlockSpec((1, tile_n), lambda i: (0, i))),
        ),
        compiler_params=pltpu.CompilerParams(
            dimension_semantics=("parallel",)),
    )(rot9, t3, rng6, nvalid, corners_cm, ry_row)


def late_fusion_boxes(box_lidar, box_ry, rot, tvec, pc_range, tile_n=1024):
    """box_lidar: (N, 8, 3); box_ry: (N,); rot: (3, 3); tvec: (3,); pc_range: (2, 3).

    Returns NumPy (box_t (N,8,3), arrows (N,2,3), keep mask (N,) bool), matching the
    torch module's post-processing.  Layout prep (to coordinate-major, lane-dense,
    N padded to a multiple of TILE_N) is done once in NumPy upstream — no XLA
    transposes around the Pallas call.
    """
    box_lidar = np.asarray(box_lidar, dtype=np.float32)
    box_ry = np.asarray(box_ry, dtype=np.float32)
    N = box_lidar.shape[0]

    # TILE_N: multiple of 128; ~<1 MiB/step at 1024, safe on v7x's 64 MiB VMEM; can be
    # raised 2-4x on v5e/v6e (128 MiB VMEM) to amortize per-grid-step overhead.
    assert tile_n % 128 == 0
    tile_n = max(128, min(int(tile_n), _round_up(N, 128)))
    npad = _round_up(N, tile_n)

    corners_cm = np.zeros((3, 8, npad), dtype=np.float32)
    corners_cm[:, :, :N] = np.transpose(box_lidar, (2, 1, 0))      # (coord, corner, box)
    ry_row = np.zeros((1, npad), dtype=np.float32)
    ry_row[0, :N] = box_ry

    rot9 = np.asarray(rot, dtype=np.float32).reshape(9)
    t3 = np.asarray(tvec, dtype=np.float32).reshape(3)
    rng6 = np.asarray(pc_range, dtype=np.float32).reshape(6)       # [xmin,ymin,zmin,xmax,ymax,zmax]
    nvalid = np.array([N], dtype=np.int32)

    outs = _pallas_late_fusion(rot9, t3, rng6, nvalid, corners_cm, ry_row, tile_n=tile_n)
    jax.block_until_ready(outs)
    corners_t, arrows6, mask = (np.asarray(o) for o in outs)

    box_t = np.transpose(corners_t[:, :, :N], (2, 1, 0))           # (N, 8, 3)
    arrows = np.transpose(arrows6.reshape(2, 3, npad)[:, :, :N], (2, 0, 1))   # (N, 2, 3)
    keep = mask[0, :N].astype(bool)
    return box_t, arrows, keep


if __name__ == "__main__":
    key = jax.random.PRNGKey(0)
    N = 16
    k1, k2, k3 = jax.random.split(key, 3)

    # synthetic "detector output": box corners around random centers, plus yaw
    centers = jax.random.uniform(k1, (N, 1, 3), minval=-20.0, maxval=20.0)
    offsets = jax.random.uniform(k2, (N, 8, 3), minval=-1.5, maxval=1.5)
    box_lidar = np.asarray(centers + offsets, dtype=np.float32)         # (N, 8, 3)
    box_ry = np.asarray(jax.random.uniform(k3, (N,), minval=-np.pi, maxval=np.pi),
                        dtype=np.float32)

    # deterministic infra->vehicle rigid transform (yaw rotation + translation)
    theta = 0.3
    rot = np.array([[np.cos(theta), -np.sin(theta), 0.0],
                    [np.sin(theta),  np.cos(theta), 0.0],
                    [0.0,            0.0,           1.0]], dtype=np.float32)
    tvec = np.array([1.0, -2.0, 0.5], dtype=np.float32)
    pc_range = np.array([[-30.0, -30.0, -5.0],
                         [30.0,  30.0,  5.0]], dtype=np.float32)

    box_t, arrows, keep = late_fusion_boxes(box_lidar, box_ry, rot, tvec, pc_range)

    # --- correctness check against a NumPy reference of the same math ---
    ref_corners = box_lidar @ rot.T + tvec
    ref_center = box_lidar.mean(axis=1)
    ref_arrow_end = ref_center + np.stack(
        [np.cos(box_ry), np.sin(box_ry), np.zeros_like(box_ry)], axis=-1)
    ref_arrows = np.stack([ref_center @ rot.T + tvec, ref_arrow_end @ rot.T + tvec], axis=1)
    assert np.allclose(box_t, ref_corners, atol=1e-3)
    assert np.allclose(arrows, ref_arrows, atol=1e-3)
    inside_k = (box_t >= pc_range[0]) & (box_t <= pc_range[1])
    assert np.array_equal(keep, inside_k.all(axis=-1).any(axis=-1))
    assert box_t.shape == (N, 8, 3) and arrows.shape == (N, 2, 3) and keep.shape == (N,)

    # host-side glue mirroring `remain = [...]; box = box[remain]` + gen_pred_dict.
    # TODO(synk): detector inference, pkl caching, pipe.send and the dynamic box[remain]
    # gather are host-side only (no Pallas equivalent).
    remain = np.nonzero(keep)[0]
    scores = np.linspace(0.1, 0.9, N).astype(np.float32)
    labels = np.full((N,), 2, dtype=np.int64)              # camera branch sets all labels to 2
    if len(remain) >= 1:
        box_sel, arrows_sel = box_t[remain], arrows[remain]
        scores_sel, labels_sel = scores[remain], labels[remain]
    else:
        box_sel, arrows_sel = np.zeros((1, 8, 3)), np.zeros((1, 2, 3))
        scores_sel, labels_sel = np.zeros(1), np.zeros(1)

    pred_dict = gen_pred_dict("000001", 0.0, box_sel, arrows_sel,
                              np.array([]), scores_sel.tolist(), labels_sel.tolist())
    assert len(pred_dict["boxes_3d"]) == max(len(remain), 1)
    print("KERNEL_OK")
</pallas_src>

<mosaic_0001>
module attributes {stable_mosaic.version = 11 : i64} {
  func.func @_late_fusion_kernel(%arg0: i32, %arg1: memref<9xf32, #tpu.memory_space<smem>>, %arg2: memref<3xf32, #tpu.memory_space<smem>>, %arg3: memref<6xf32, #tpu.memory_space<smem>>, %arg4: memref<1xi32, #tpu.memory_space<smem>>, %arg5: memref<3x8x128xf32, #tpu.memory_space<vmem>>, %arg6: memref<1x128xf32, #tpu.memory_space<vmem>>, %arg7: memref<3x8x128xf32, #tpu.memory_space<vmem>>, %arg8: memref<6x128xf32, #tpu.memory_space<vmem>>, %arg9: memref<1x128xi32, #tpu.memory_space<vmem>>) attributes {dimension_semantics = [#tpu.dimension_semantics<parallel>], iteration_bounds = array<i64: 1>, scalar_prefetch = 0 : i64, scratch_operands = 0 : i64, tpu.core_type = #tpu.core_type<tc>, window_params = [{transform_indices = @transform_0, window_bounds = array<i64: 9>}, {transform_indices = @transform_1, window_bounds = array<i64: 3>}, {transform_indices = @transform_2, window_bounds = array<i64: 6>}, {transform_indices = @transform_3, window_bounds = array<i64: 1>}, {transform_indices = @transform_4, window_bounds = array<i64: 3, 8, 128>}, {transform_indices = @transform_5, window_bounds = array<i64: 1, 128>}, {transform_indices = @transform_6, window_bounds = array<i64: 3, 8, 128>}, {transform_indices = @transform_7, window_bounds = array<i64: 6, 128>}, {transform_indices = @transform_8, window_bounds = array<i64: 1, 128>}]} {
    %c0 = arith.constant 0 : index
    %c0_0 = arith.constant 0 : index
    %c0_1 = arith.constant 0 : index
    %0 = vector.load %arg5[%c0, %c0_0, %c0_1] : memref<3x8x128xf32, #tpu.memory_space<vmem>>, vector<1x8x128xf32>
    %1 = vector.shape_cast %0 : vector<1x8x128xf32> to vector<8x128xf32>
    %c1 = arith.constant 1 : index
    %c0_2 = arith.constant 0 : index
    %c0_3 = arith.constant 0 : index
    %2 = vector.load %arg5[%c1, %c0_2, %c0_3] : memref<3x8x128xf32, #tpu.memory_space<vmem>>, vector<1x8x128xf32>
    %3 = vector.shape_cast %2 : vector<1x8x128xf32> to vector<8x128xf32>
    %c2 = arith.constant 2 : index
    %c0_4 = arith.constant 0 : index
    %c0_5 = arith.constant 0 : index
    %4 = vector.load %arg5[%c2, %c0_4, %c0_5] : memref<3x8x128xf32, #tpu.memory_space<vmem>>, vector<1x8x128xf32>
    %5 = vector.shape_cast %4 : vector<1x8x128xf32> to vector<8x128xf32>
    %cst = arith.constant dense<0.000000e+00> : vector<128xf32>
    %6 = vector.multi_reduction <add>, %1, %cst [0] : vector<8x128xf32> to vector<128xf32>
    %7 = vector.shape_cast %6 : vector<128xf32> to vector<1x128xf32>
    %cst_6 = arith.constant 8.000000e+00 : f32
    %8 = vector.broadcast %cst_6 : f32 to vector<1x128xf32>
    %9 = arith.divf %7, %8 : vector<1x128xf32>
    %cst_7 = arith.constant dense<0.000000e+00> : vector<128xf32>
    %10 = vector.multi_reduction <add>, %3, %cst_7 [0] : vector<8x128xf32> to vector<128xf32>
    %11 = vector.shape_cast %10 : vector<128xf32> to vector<1x128xf32>
    %cst_8 = arith.constant 8.000000e+00 : f32
    %12 = vector.broadcast %cst_8 : f32 to vector<1x128xf32>
    %13 = arith.divf %11, %12 : vector<1x128xf32>
    %cst_9 = arith.constant dense<0.000000e+00> : vector<128xf32>
    %14 = vector.multi_reduction <add>, %5, %cst_9 [0] : vector<8x128xf32> to vector<128xf32>
    %15 = vector.shape_cast %14 : vector<128xf32> to vector<1x128xf32>
    %cst_10 = arith.constant 8.000000e+00 : f32
    %16 = vector.broadcast %cst_10 : f32 to vector<1x128xf32>
    %17 = arith.divf %15, %16 : vector<1x128xf32>
    %c0_11 = arith.constant 0 : index
    %c0_12 = arith.constant 0 : index
    %18 = vector.load %arg6[%c0_11, %c0_12] : memref<1x128xf32, #tpu.memory_space<vmem>>, vector<1x128xf32>
    %19 = math.cos %18 : vector<1x128xf32>
    %20 = arith.addf %9, %19 : vector<1x128xf32>
    %21 = math.sin %18 : vector<1x128xf32>
    %22 = arith.addf %13, %21 : vector<1x128xf32>
    %c0_13 = arith.constant 0 : index
    %23 = memref.load %arg1[%c0_13] : memref<9xf32, #tpu.memory_space<smem>>
    %c1_14 = arith.constant 1 : index
    %24 = memref.load %arg1[%c1_14] : memref<9xf32, #tpu.memory_space<smem>>
    %c2_15 = arith.constant 2 : index
    %25 = memref.load %arg1[%c2_15] : memref<9xf32, #tpu.memory_space<smem>>
    %c3 = arith.constant 3 : index
    %26 = memref.load %arg1[%c3] : memref<9xf32, #tpu.memory_space<smem>>
    %c4 = arith.constant 4 : index
    %27 = memref.load %arg1[%c4] : memref<9xf32, #tpu.memory_space<smem>>
    %c5 = arith.constant 5 : index
    %28 = memref.load %arg1[%c5] : memref<9xf32, #tpu.memory_space<smem>>
    %c6 = arith.constant 6 : index
    %29 = memref.load %arg1[%c6] : memref<9xf32, #tpu.memory_space<smem>>
    %c7 = arith.constant 7 : index
    %30 = memref.load %arg1[%c7] : memref<9xf32, #tpu.memory_space<smem>>
    %c8 = arith.constant 8 : index
    %31 = memref.load %arg1[%c8] : memref<9xf32, #tpu.memory_space<smem>>
    %c0_16 = arith.constant 0 : index
    %32 = memref.load %arg2[%c0_16] : memref<3xf32, #tpu.memory_space<smem>>
    %c1_17 = arith.constant 1 : index
    %33 = memref.load %arg2[%c1_17] : memref<3xf32, #tpu.memory_space<smem>>
    %c2_18 = arith.constant 2 : index
    %34 = memref.load %arg2[%c2_18] : memref<3xf32, #tpu.memory_space<smem>>
    %35 = vector.broadcast %23 : f32 to vector<8x128xf32>
    %36 = arith.mulf %35, %1 : vector<8x128xf32>
    %37 = vector.broadcast %24 : f32 to vector<8x128xf32>
    %38 = arith.mulf %37, %3 : vector<8x128xf32>
    %39 = arith.addf %36, %38 : vector<8x128xf32>
    %40 = vector.broadcast %25 : f32 to vector<8x128xf32>
    %41 = arith.mulf %40, %5 : vector<8x128xf32>
    %42 = arith.addf %39, %41 : vector<8x128xf32>
    %43 = vector.broadcast %32 : f32 to vector<8x128xf32>
    %44 = arith.addf %42, %43 : vector<8x128xf32>
    %c0_19 = arith.constant 0 : index
    %c0_20 = arith.constant 0 : index
    %c0_21 = arith.constant 0 : index
    %45 = vector.load %arg7[%c0_19, %c0_20, %c0_21] : memref<3x8x128xf32, #tpu.memory_space<vmem>>, vector<1x8x128xf32>
    %46 = vector.shape_cast %45 : vector<1x8x128xf32> to vector<8x128xf32>
    %47 = vector.shape_cast %44 : vector<8x128xf32> to vector<1x8x128xf32>
    tpu.vector_store %arg7[%c0_19, %c0_20, %c0_21], %47 {strides = array<i32>} : memref<3x8x128xf32, #tpu.memory_space<vmem>>, vector<1x8x128xf32>,
    %c0_22 = arith.constant 0 : index
    %48 = memref.load %arg3[%c0_22] : memref<6xf32, #tpu.memory_space<smem>>
    %49 = vector.broadcast %48 : f32 to vector<8x128xf32>
    %50 = arith.cmpf oge, %44, %49 : vector<8x128xf32>
    %c3_23 = arith.constant 3 : index
    %51 = memref.load %arg3[%c3_23] : memref<6xf32, #tpu.memory_space<smem>>
    %52 = vector.broadcast %51 : f32 to vector<8x128xf32>
    %53 = arith.cmpf ole, %44, %52 : vector<8x128xf32>
    %54 = arith.andi %50, %53 : vector<8x128xi1>
    %55 = vector.broadcast %23 : f32 to vector<1x128xf32>
    %56 = arith.mulf %55, %9 : vector<1x128xf32>
    %57 = vector.broadcast %24 : f32 to vector<1x128xf32>
    %58 = arith.mulf %57, %13 : vector<1x128xf32>
    %59 = arith.addf %56, %58 : vector<1x128xf32>
    %60 = vector.broadcast %25 : f32 to vector<1x128xf32>
    %61 = arith.mulf %60, %17 : vector<1x128xf32>
    %62 = arith.addf %59, %61 : vector<1x128xf32>
    %63 = vector.broadcast %32 : f32 to vector<1x128xf32>
    %64 = arith.addf %62, %63 : vector<1x128xf32>
    %65 = vector.broadcast %23 : f32 to vector<1x128xf32>
    %66 = arith.mulf %65, %20 : vector<1x128xf32>
    %67 = vector.broadcast %24 : f32 to vector<1x128xf32>
    %68 = arith.mulf %67, %22 : vector<1x128xf32>
    %69 = arith.addf %66, %68 : vector<1x128xf32>
    %70 = vector.broadcast %25 : f32 to vector<1x128xf32>
    %71 = arith.mulf %70, %17 : vector<1x128xf32>
    %72 = arith.addf %69, %71 : vector<1x128xf32>
    %73 = vector.broadcast %32 : f32 to vector<1x128xf32>
    %74 = arith.addf %72, %73 : vector<1x128xf32>
    %75 = vector.broadcast %26 : f32 to vector<8x128xf32>
    %76 = arith.mulf %75, %1 : vector<8x128xf32>
    %77 = vector.broadcast %27 : f32 to vector<8x128xf32>
    %78 = arith.mulf %77, %3 : vector<8x128xf32>
    %79 = arith.addf %76, %78 : vector<8x128xf32>
    %80 = vector.broadcast %28 : f32 to vector<8x128xf32>
    %81 = arith.mulf %80, %5 : vector<8x128xf32>
    %82 = arith.addf %79, %81 : vector<8x128xf32>
    %83 = vector.broadcast %33 : f32 to vector<8x128xf32>
    %84 = arith.addf %82, %83 : vector<8x128xf32>
    %c1_24 = arith.constant 1 : index
    %c0_25 = arith.constant 0 : index
    %c0_26 = arith.constant 0 : index
    %85 = vector.load %arg7[%c1_24, %c0_25, %c0_26] : memref<3x8x128xf32, #tpu.memory_space<vmem>>, vector<1x8x128xf32>
    %86 = vector.shape_cast %85 : vector<1x8x128xf32> to vector<8x128xf32>
    %87 = vector.shape_cast %84 : vector<8x128xf32> to vector<1x8x128xf32>
    tpu.vector_store %arg7[%c1_24, %c0_25, %c0_26], %87 {strides = array<i32>} : memref<3x8x128xf32, #tpu.memory_space<vmem>>, vector<1x8x128xf32>,
    %c1_27 = arith.constant 1 : index
    %88 = memref.load %arg3[%c1_27] : memref<6xf32, #tpu.memory_space<smem>>
    %89 = vector.broadcast %88 : f32 to vector<8x128xf32>
    %90 = arith.cmpf oge, %84, %89 : vector<8x128xf32>
    %c4_28 = arith.constant 4 : index
    %91 = memref.load %arg3[%c4_28] : memref<6xf32, #tpu.memory_space<smem>>
    %92 = vector.broadcast %91 : f32 to vector<8x128xf32>
    %93 = arith.cmpf ole, %84, %92 : vector<8x128xf32>
    %94 = arith.andi %90, %93 : vector<8x128xi1>
    %95 = arith.andi %54, %94 : vector<8x128xi1>
    %96 = vector.broadcast %26 : f32 to vector<1x128xf32>
    %97 = arith.mulf %96, %9 : vector<1x128xf32>
    %98 = vector.broadcast %27 : f32 to vector<1x128xf32>
    %99 = arith.mulf %98, %13 : vector<1x128xf32>
    %100 = arith.addf %97, %99 : vector<1x128xf32>
    %101 = vector.broadcast %28 : f32 to vector<1x128xf32>
    %102 = arith.mulf %101, %17 : vector<1x128xf32>
    %103 = arith.addf %100, %102 : vector<1x128xf32>
    %104 = vector.broadcast %33 : f32 to vector<1x128xf32>
    %105 = arith.addf %103, %104 : vector<1x128xf32>
    %106 = vector.broadcast %26 : f32 to vector<1x128xf32>
    %107 = arith.mulf %106, %20 : vector<1x128xf32>
    %108 = vector.broadcast %27 : f32 to vector<1x128xf32>
    %109 = arith.mulf %108, %22 : vector<1x128xf32>
    %110 = arith.addf %107, %109 : vector<1x128xf32>
    %111 = vector.broadcast %28 : f32 to vector<1x128xf32>
    %112 = arith.mulf %111, %17 : vector<1x128xf32>
    %113 = arith.addf %110, %112 : vector<1x128xf32>
    %114 = vector.broadcast %33 : f32 to vector<1x128xf32>
    %115 = arith.addf %113, %114 : vector<1x128xf32>
    %116 = vector.broadcast %29 : f32 to vector<8x128xf32>
    %117 = arith.mulf %116, %1 : vector<8x128xf32>
    %118 = vector.broadcast %30 : f32 to vector<8x128xf32>
    %119 = arith.mulf %118, %3 : vector<8x128xf32>
    %120 = arith.addf %117, %119 : vector<8x128xf32>
    %121 = vector.broadcast %31 : f32 to vector<8x128xf32>
    %122 = arith.mulf %121, %5 : vector<8x128xf32>
    %123 = arith.addf %120, %122 : vector<8x128xf32>
    %124 = vector.broadcast %34 : f32 to vector<8x128xf32>
    %125 = arith.addf %123, %124 : vector<8x128xf32>
    %c2_29 = arith.constant 2 : index
    %c0_30 = arith.constant 0 : index
    %c0_31 = arith.constant 0 : index
    %126 = vector.load %arg7[%c2_29, %c0_30, %c0_31] : memref<3x8x128xf32, #tpu.memory_space<vmem>>, vector<1x8x128xf32>
    %127 = vector.shape_cast %126 : vector<1x8x128xf32> to vector<8x128xf32>
    %128 = vector.shape_cast %125 : vector<8x128xf32> to vector<1x8x128xf32>
    tpu.vector_store %arg7[%c2_29, %c0_30, %c0_31], %128 {strides = array<i32>} : memref<3x8x128xf32, #tpu.memory_space<vmem>>, vector<1x8x128xf32>,
    %c2_32 = arith.constant 2 : index
    %129 = memref.load %arg3[%c2_32] : memref<6xf32, #tpu.memory_space<smem>>
    %130 = vector.broadcast %129 : f32 to vector<8x128xf32>
    %131 = arith.cmpf oge, %125, %130 : vector<8x128xf32>
    %c5_33 = arith.constant 5 : index
    %132 = memref.load %arg3[%c5_33] : memref<6xf32, #tpu.memory_space<smem>>
    %133 = vector.broadcast %132 : f32 to vector<8x128xf32>
    %134 = arith.cmpf ole, %125, %133 : vector<8x128xf32>
    %135 = arith.andi %131, %134 : vector<8x128xi1>
    %136 = arith.andi %95, %135 : vector<8x128xi1>
    %137 = vector.broadcast %29 : f32 to vector<1x128xf32>
    %138 = arith.mulf %137, %9 : vector<1x128xf32>
    %139 = vector.broadcast %30 : f32 to vector<1x128xf32>
    %140 = arith.mulf %139, %13 : vector<1x128xf32>
    %141 = arith.addf %138, %140 : vector<1x128xf32>
    %142 = vector.broadcast %31 : f32 to vector<1x128xf32>
    %143 = arith.mulf %142, %17 : vector<1x128xf32>
    %144 = arith.addf %141, %143 : vector<1x128xf32>
    %145 = vector.broadcast %34 : f32 to vector<1x128xf32>
    %146 = arith.addf %144, %145 : vector<1x128xf32>
    %147 = vector.broadcast %29 : f32 to vector<1x128xf32>
    %148 = arith.mulf %147, %20 : vector<1x128xf32>
    %149 = vector.broadcast %30 : f32 to vector<1x128xf32>
    %150 = arith.mulf %149, %22 : vector<1x128xf32>
    %151 = arith.addf %148, %150 : vector<1x128xf32>
    %152 = vector.broadcast %31 : f32 to vector<1x128xf32>
    %153 = arith.mulf %152, %17 : vector<1x128xf32>
    %154 = arith.addf %151, %153 : vector<1x128xf32>
    %155 = vector.broadcast %34 : f32 to vector<1x128xf32>
    %156 = arith.addf %154, %155 : vector<1x128xf32>
    %157 = tpu.concatenate %64, %105, %146, %74, %115, %156 in 0 : vector<1x128xf32>, vector<1x128xf32>, vector<1x128xf32>, vector<1x128xf32>, vector<1x128xf32>, vector<1x128xf32> -> vector<6x128xf32>
    %c0_34 = arith.constant 0 : index
    %c0_35 = arith.constant 0 : index
    %158 = vector.load %arg8[%c0_34, %c0_35] : memref<6x128xf32, #tpu.memory_space<vmem>>, vector<6x128xf32>
    tpu.vector_store %arg8[%c0_34, %c0_35], %157 {strides = array<i32>} : memref<6x128xf32, #tpu.memory_space<vmem>>, vector<6x128xf32>,
    %cst_36 = arith.constant 1.000000e+00 : f32
    %cst_37 = arith.constant 0.000000e+00 : f32
    %159 = vector.broadcast %cst_36 : f32 to vector<8x128xf32>
    %160 = vector.broadcast %cst_37 : f32 to vector<8x128xf32>
    %161 = arith.select %136, %159, %160 : vector<8x128xi1>, vector<8x128xf32>
    %cst_38 = arith.constant dense<0xFF800000> : vector<128xf32>
    %162 = vector.multi_reduction <maximumf>, %161, %cst_38 [0] : vector<8x128xf32> to vector<128xf32>
    %cst_39 = arith.constant 0.000000e+00 : f32
    %163 = vector.broadcast %cst_39 : f32 to vector<128xf32>
    %164 = arith.cmpf ogt, %162, %163 : vector<128xf32>
    %165 = vector.shape_cast %164 : vector<128xi1> to vector<1x128xi1>
    %166 = tpu.iota {dimensions = array<i32: 1>} : vector<1x128xi32>
    %c128_i32 = arith.constant 128 : i32
    %167 = arith.muli %arg0, %c128_i32 : i32
    %168 = vector.broadcast %167 : i32 to vector<1x128xi32>
    %169 = arith.addi %166, %168 : vector<1x128xi32>
    %c0_40 = arith.constant 0 : index
    %170 = memref.load %arg4[%c0_40] : memref<1xi32, #tpu.memory_space<smem>>
    %171 = vector.broadcast %170 : i32 to vector<1x128xi32>
    %172 = arith.cmpi slt, %169, %171 : vector<1x128xi32>
    %173 = arith.andi %165, %172 : vector<1x128xi1>
    %174 = arith.extui %173 : vector<1x128xi1> to vector<1x128xi32>
    %c0_41 = arith.constant 0 : index
    %c0_42 = arith.constant 0 : index
    %175 = vector.load %arg9[%c0_41, %c0_42] : memref<1x128xi32, #tpu.memory_space<vmem>>, vector<1x128xi32>
    tpu.vector_store %arg9[%c0_41, %c0_42], %174 {strides = array<i32>} : memref<1x128xi32, #tpu.memory_space<vmem>>, vector<1x128xi32>,
    return
  }
  func.func @transform_0(%arg0: i32) -> i32 {
    %c0_i32 = arith.constant 0 : i32
    %c0_i32_0 = arith.constant 0 : i32
    return %c0_i32 : i32
  }
  func.func @transform_1(%arg0: i32) -> i32 {
    %c0_i32 = arith.constant 0 : i32
    %c0_i32_0 = arith.constant 0 : i32
    return %c0_i32 : i32
  }
  func.func @transform_2(%arg0: i32) -> i32 {
    %c0_i32 = arith.constant 0 : i32
    %c0_i32_0 = arith.constant 0 : i32
    return %c0_i32 : i32
  }
  func.func @transform_3(%arg0: i32) -> i32 {
    %c0_i32 = arith.constant 0 : i32
    %c0_i32_0 = arith.constant 0 : i32
    return %c0_i32 : i32
  }
  func.func @transform_4(%arg0: i32) -> (i32, i32, i32) {
    %c0_i32 = arith.constant 0 : i32
    %c0_i32_0 = arith.constant 0 : i32
    %c0_i32_1 = arith.constant 0 : i32
    return %c0_i32, %c0_i32_0, %arg0 : i32, i32, i32
  }
  func.func @transform_5(%arg0: i32) -> (i32, i32) {
    %c0_i32 = arith.constant 0 : i32
    %c0_i32_0 = arith.constant 0 : i32
    return %c0_i32, %arg0 : i32, i32
  }
  func.func @transform_6(%arg0: i32) -> (i32, i32, i32) {
    %c0_i32 = arith.constant 0 : i32
    %c0_i32_0 = arith.constant 0 : i32
    %c0_i32_1 = arith.constant 0 : i32
    return %c0_i32, %c0_i32_0, %arg0 : i32, i32, i32
  }
  func.func @transform_7(%arg0: i32) -> (i32, i32) {
    %c0_i32 = arith.constant 0 : i32
    %c0_i32_0 = arith.constant 0 : i32
    return %c0_i32, %arg0 : i32, i32
  }
  func.func @transform_8(%arg0: i32) -> (i32, i32) {
    %c0_i32 = arith.constant 0 : i32
    %c0_i32_0 = arith.constant 0 : i32
    return %c0_i32, %arg0 : i32, i32
  }
}

</mosaic_0001>

<llo_original>
// kernel: tpu_custom_call.1
$region0: #{tpu_custom_call.1}
  #allocation0 [shape = 'u32[]', space=smem, size = 0x4, offset = 0x4, fixed_abs, tag = 'smem constant byte address 0x4 - core index']
  #allocation1 [shape = 'u32[144,128]{1,0:T(1,128)}', space=vmem, size = 0x12000, scoped, tag = 'internal scratch']
  #allocation2 [shape = 's32[1]{0:T(128)S(6)}', space=smem, size = 0x200, scoped, tag = 'scoped memory for tpu_custom_call.1']
  %s0 = inlined_call_operand.vmem [shape: f32[9], index: 0, kind: input, shape index: {}]
  %s1 = inlined_call_operand.vmem [shape: f32[3], index: 1, kind: input, shape index: {}]
  %s2 = inlined_call_operand.vmem [shape: f32[6], index: 2, kind: input, shape index: {}]
  %s3 = inlined_call_operand.<no memory space> [shape: s32[1], index: 3, kind: input, shape index: {}]
  %s4 = inlined_call_operand.hbm [shape: f32[3,8,128], index: 4, kind: input, shape index: {}]
  %s5 = inlined_call_operand.vmem [shape: f32[1,128], index: 5, kind: input, shape index: {}]
  %s6 = inlined_call_operand.hbm [shape: f32[3,8,128], index: 6, kind: output, shape index: {0}]
  %s7 = inlined_call_operand.hbm [shape: f32[6,128], index: 7, kind: output, shape index: {1}]
  %s8 = inlined_call_operand.hbm [shape: s32[1,128], index: 8, kind: output, shape index: {2}]
  %9 = xla_tuple %s6, %s7, %s8
  %s10 = sld [smem:[#allocation0]]
  $region66: #{tpu_custom_call.1} parent=0
    _
  %s12 = ssub.s32 1, %s10
  %s13 = scalar_select 0, %s12, %s10
  %14 = sst [smem:[#allocation2]] %s3
  $region1: #{tpu_custom_call.1} parent=0
    #allocation3 [shape = 'u8[512]{0}', space=smem, size = 0x200, scoped, tag = 'input window, operand 0, single buffered']
    #allocation4 [shape = 's32[1]{0}', space=sflag, size = 0x4, scoped, tag = 'scoped memory for tpu_custom_call.1']
    #allocation5 [shape = 's32[1]{0}', space=sflag, size = 0x4, scoped, tag = 'scoped memory for tpu_custom_call.1']
    #allocation6 [shape = 's32[1]{0}', space=sflag, size = 0x4, scoped, tag = 'scoped memory for tpu_custom_call.1']
    #allocation7 [shape = 'u8[512]{0}', space=smem, size = 0x200, scoped, tag = 'input window, operand 1, single buffered']
    #allocation8 [shape = 's32[1]{0}', space=sflag, size = 0x4, scoped, tag = 'scoped memory for tpu_custom_call.1']
    #allocation9 [shape = 'u8[512]{0}', space=smem, size = 0x200, scoped, tag = 'input window, operand 2, single buffered']
    #allocation10 [shape = 'u8[12288]{0}', space=vmem, size = 0x3000, scoped, tag = 'input window, operand 4, single buffered']
    #allocation11 [shape = 'u8[12288]{0}', space=vmem, size = 0x3000, scoped, tag = 'output window, operand 0, single buffered']
    #allocation12 [shape = 'u8[4096]{0}', space=vmem, size = 0x1000, scoped, tag = 'output window, operand 1, single buffered']
    #allocation13 [shape = 's32[1]{0}', space=sflag, size = 0x4, scoped, tag = 'scoped memory for tpu_custom_call.1']
    #allocation14 [shape = 'u8[512]{0}', space=vmem, size = 0x400, scoped, tag = 'output window, operand 2, single buffered']
    %15 = vsyncpa [#allocation6], 0
    %16 = vsyncpa [#allocation8], 0
    %17 = vsyncpa [#allocation4], 0
    %18 = vsyncpa [#allocation5], 0
    %19 = vsyncpa [#allocation13], 0
    // Predicated region
    $region2: #{tpu_custom_call.1} parent=1 // pred_check
      _
    $region3: #{tpu_custom_call.1} parent=1 // pred_check_branch
      %21 = sbr.rel (0) target = $region5
    $region4: #{tpu_custom_call.1} parent=1 // pred_region
      %s23 = ssub.s32 16, 16
      %24 = vsyncadd [#allocation6], %s23
      %s26 = sshll.u32 %s0, 4
      %s27 = int_to_ptr.vmem [resolvable:$true] %s26
      %29 = dma.vmem_to_smem %s27, 16, [#allocation3], [#allocation6]
    $region5: #{tpu_custom_call.1} parent=1 // pred_fallthru
      _
    // Predicated region
    $region6: #{tpu_custom_call.1} parent=1 // pred_check
      _
    $region7: #{tpu_custom_call.1} parent=1 // pred_check_branch
      %31 = sbr.rel (0) target = $region9
    $region8: #{tpu_custom_call.1} parent=1 // pred_region
      %s33 = ssub.s32 16, 16
      %34 = vsyncadd [#allocation8], %s33
      %s36 = sshll.u32 %s1, 4
      %s37 = int_to_ptr.vmem [resolvable:$true] %s36
      %39 = dma.vmem_to_smem %s37, 16, [#allocation7], [#allocation8]
    $region9: #{tpu_custom_call.1} parent=1 // pred_fallthru
      _
    // Predicated region
    $region10: #{tpu_custom_call.1} parent=1 // pred_check
      _
    $region11: #{tpu_custom_call.1} parent=1 // pred_check_branch
      %41 = sbr.rel (0) target = $region13
    $region12: #{tpu_custom_call.1} parent=1 // pred_region
      %s43 = ssub.s32 16, 16
      %44 = vsyncadd [#allocation8], %s43
      %s46 = sshll.u32 %s2, 4
      %s47 = int_to_ptr.vmem [resolvable:$true] %s46
      %49 = dma.vmem_to_smem %s47, 16, [#allocation9], [#allocation8]
    $region13: #{tpu_custom_call.1} parent=1 // pred_fallthru
      _
    // Predicated region
    $region14: #{tpu_custom_call.1} parent=1 // pred_check
      _
    $region15: #{tpu_custom_call.1} parent=1 // pred_check_branch
      %51 = sbr.rel (0) target = $region17
    $region16: #{tpu_custom_call.1} parent=1 // pred_region
      _
    $region17: #{tpu_custom_call.1} parent=1 // pred_fallthru
      _
    // Predicated region
    $region18: #{tpu_custom_call.1} parent=1 // pred_check
      _
    $region19: #{tpu_custom_call.1} parent=1 // pred_check_branch
      %53 = sbr.rel (0) target = $region21
    $region20: #{tpu_custom_call.1} parent=1 // pred_region
      %s55 = ssub.s32 384, 384
      %56 = vsyncadd [#allocation4], %s55
      %s57 = sshll.u32 [#allocation10], 4
      %s58 = int_to_ptr.vmem [resolvable:$true] %s57
      %63 = dma.hbm_to_vmem [thread:$0]  %s4, 384, %s58, [#allocation4], 128, 128, 8
    $region21: #{tpu_custom_call.1} parent=1 // pred_fallthru
      _
    // Predicated region
    $region22: #{tpu_custom_call.1} parent=1 // pred_check
      _
    $region23: #{tpu_custom_call.1} parent=1 // pred_check_branch
      %65 = sbr.rel (0) target = $region25
    $region24: #{tpu_custom_call.1} parent=1 // pred_region
      _
    $region25: #{tpu_custom_call.1} parent=1 // pred_fallthru
      _
    // Predicated region
    $region26: #{tpu_custom_call.1} parent=1 // pred_check
      _
    $region27: #{tpu_custom_call.1} parent=1 // pred_check_branch
      %67 = sbr.rel (0) target = $region29
    $region28: #{tpu_custom_call.1} parent=1 // pred_region
      %68 = dma.done [#allocation6], 16
    $region29: #{tpu_custom_call.1} parent=1 // pred_fallthru
      _
    // Predicated region
    $region30: #{tpu_custom_call.1} parent=1 // pred_check
      _
    $region31: #{tpu_custom_call.1} parent=1 // pred_check_branch
      %70 = sbr.rel (0) target = $region33
    $region32: #{tpu_custom_call.1} parent=1 // pred_region
      %71 = dma.done [#allocation8], 16
    $region33: #{tpu_custom_call.1} parent=1 // pred_fallthru
      _
    // Predicated region
    $region34: #{tpu_custom_call.1} parent=1 // pred_check
      _
    $region35: #{tpu_custom_call.1} parent=1 // pred_check_branch
      %73 = sbr.rel (0) target = $region37
    $region36: #{tpu_custom_call.1} parent=1 // pred_region
      %74 = dma.done [#allocation8], 16
    $region37: #{tpu_custom_call.1} parent=1 // pred_fallthru
      _
    // Predicated region
    $region38: #{tpu_custom_call.1} parent=1 // pred_check
      _
    $region39: #{tpu_custom_call.1} parent=1 // pred_check_branch
      %76 = sbr.rel (0) target = $region41
    $region40: #{tpu_custom_call.1} parent=1 // pred_region
      %77 = dma.done [#allocation4], 384
    $region41: #{tpu_custom_call.1} parent=1 // pred_fallthru
      _
    %78 = sfence
    %v79 = vld [vmem:[#allocation10] sm:$0xff]
    %s80 = scalar_lea.vmem [#allocation10], 8
    %v81 = vld [vmem:[%s80] sm:$0xff]
    %s82 = scalar_lea.vmem [#allocation10], 16
    %v83 = vld [vmem:[%s82] sm:$0xff]
    %v84 = vrot.slane %v79, 4
    %v85 = vadd.f32 %v79, %v84
    %v86 = vrot.slane %v85, 2
    %v87 = vadd.f32 %v85, %v86
    %v88 = vrot.slane %v87, 1
    %v89 = vadd.f32 %v87, %v88
    %v90 = vrcp.pop 8.0
    %v91 = vmul.f32 %v89, %v90
    %v92 = vrot.slane %v81, 4
    %v93 = vadd.f32 %v81, %v92
    %v94 = vrot.slane %v93, 2
    %v95 = vadd.f32 %v93, %v94
    %v96 = vrot.slane %v95, 1
    %v97 = vadd.f32 %v95, %v96
    %v98 = vmul.f32 %v97, %v90
    %v99 = vrot.slane %v83, 4
    %v100 = vadd.f32 %v83, %v99
    %v101 = vrot.slane %v100, 2
    %v102 = vadd.f32 %v100, %v101
    %v103 = vrot.slane %v102, 1
    %v104 = vadd.f32 %v102, %v103
    %v105 = vmul.f32 %v104, %v90
    %v106 = vld [vmem:[%s5] sm:$0x1]
    %v107 = vand.u32 2147483647, %v106
    %vm108 = vcmp.le.f32.partialorder %v107, 0.7853982
    %vm109 = vcmp.lt.s32.totalorder %v106, 0
    %v110 = vand.u32 %v106, 2139095040
    %v111 = vshrl.u32 %v110, 23
    %v112 = vsub.s32 %v111, 127
    %v113 = vand.u32 2147483647, %v106
    %v114 = vand.u32 %v113, 8388607
    %v115 = vor.u32 %v114, 8388608
    %v116 = vsub.s32 0, %v115
    %v117 = vadd.s32 %v112, 1
    %vm118 = vcmp.gt.s32.totalorder %v117, 0
    %v119 = vsel %vm118, %v117, 0
    %v120 = vshrl.u32 %v119, 5
    %v121 = vand.u32 %v119, 31
    %v122 = vsub.s32 32, %v121
    %v123 = vshrl.u32 683565275, %v122
    %v124 = vshll.u32 683565275, %v121
    %v125 = vshrl.u32 2475754826, %v122
    %v126 = vor.u32 %v124, %v125
    %v127 = vshll.u32 2475754826, %v121
    %v128 = vshrl.u32 2131351028, %v122
    %v129 = vor.u32 %v127, %v128
    %v130 = vshll.u32 2131351028, %v121
    %v131 = vshrl.u32 2102212464, %v122
    %v132 = vor.u32 %v130, %v131
    %v133 = vshll.u32 2102212464, %v121
    %v134 = vshrl.u32 920167782, %v122
    %v135 = vor.u32 %v133, %v134
    %v136 = vshll.u32 920167782, %v121
    %v137 = vshrl.u32 1326507024, %v122
    %v138 = vor.u32 %v136, %v137
    %vm139 = vcmp.lt.s32.totalorder %v120, 1
    %vm140 = vcmp.lt.s32.totalorder %v120, 2
    %vm141 = vcmp.lt.s32.totalorder %v120, 3
    %vm142 = vcmp.lt.s32.totalorder %v120, 4
    %v143 = vsel %vm139, %v123, %v126
    %v144 = vsel %vm142, %v132, 2102212464
    %v145 = vsel %vm141, %v129, %v144
    %v146 = vsel %vm140, %v143, %v145
    %v147 = vsel %vm139, %v126, %v129
    %v148 = vsel %vm142, %v135, 920167782
    %v149 = vsel %vm141, %v132, %v148
    %v150 = vsel %vm140, %v147, %v149
    %v151 = vsel %vm139, %v129, %v132
    %v152 = vsel %vm142, %v138, 1326507024
    %v153 = vsel %vm141, %v135, %v152
    %v154 = vsel %vm140, %v151, %v153
    %v155 = vshll.u32 %v115, 8
    %v156 = vmul.u32.u64.compose %v155, %v154
    %v157 = vextract.low.u32 %v156
    %v158 = vextract.high.u32 %v156
    %v159 = vmul.u32.u64.compose %v155, %v150
    %v160 = vextract.low.u32 %v159
    %v161 = vextract.high.u32 %v159
    %v162 = vmul.u32 %v155, %v146
    %v163 = vadd.s32 %v158, %v160
    %vm164 = vc.u32 %v158, %v160
    %v165 = vadd.s32 %v161, 1
    %v166 = vsel %vm164, %v165, %v161
    %v167 = vadd.s32 %v162, %v166
    %v168 = vadd.s32 %v167, 536870912
    %v169 = vshrl.u32 %v168, 30
    %v170 = vshll.u32 %v169, 30
    %v171 = vsub.s32 %v167, %v170
    %vm172 = vcmp.lt.s32.totalorder %v171, 0
    %v173 = vsub.s32 0, %v171
    %v174 = vsel %vm172, %v173, %v171
    %v175 = vclz %v174
    %v176 = vsub.s32 %v175, 2
    %vm177 = vcmp.gt.s32.totalorder 0, %v176
    %v178 = vsel %vm177, 0, %v176
    %v179 = vsub.s32 32, %v178
    %v180 = vshll.u32 %v171, %v178
    %v181 = vshrl.u32 %v163, %v179
    %v182 = vor.u32 %v180, %v181
    %v183 = vsub.s32 4294967266, %v178
    %v184 = vadd.s32 %v183, 127
    %v185 = vshll.u32 %v184, 23
    %v186 = vor.u32 4788187, %v185
    %v187 = vand.u32 2147483647, %v186
    %v189 = vcvt.s32.f32 %v182
    %v190 = vmul.f32 %v189, %v187
    %v191 = vxor.u32 %v190, 2147483648
    %v192 = vsel %vm109, %v191, %v190
    %v193 = vsub.s32 4, %v169
    %v194 = vsel %vm109, %v193, %v169
    %v195 = vsel %vm108, %v106, %v192
    %v196 = vsel %vm108, 0, %v194
    %v197 = vcosq.f32.pop %v195
    %v198 = vsinq.f32.pop %v195
    %vm199 = vweird.f32 %v106
    %v200 = vand.u32 %v196, 3
    %vm201 = vcmp.lt.s32.totalorder %v200, 2
    %vm202 = vcmp.eq.s32.totalorder %v200, 0
    %v203 = vxor.u32 %v198, 2147483648
    %v204 = vsel %vm202, %v197, %v203
    %vm205 = vcmp.eq.s32.totalorder %v200, 2
    %v206 = vxor.u32 %v197, 2147483648
    %v207 = vsel %vm205, %v206, %v198
    %v208 = vsel %vm201, %v204, %v207
    %v209 = vsel %vm199, nan, %v208
    %v210 = vadd.f32 %v91, %v209
    %v211 = vand.u32 2147483647, %v106
    %vm212 = vcmp.le.f32.partialorder %v211, 0.7853982
    %vm213 = vcmp.lt.s32.totalorder %v106, 0
    %v214 = vand.u32 %v106, 2139095040
    %v215 = vshrl.u32 %v214, 23
    %v216 = vsub.s32 %v215, 127
    %v217 = vand.u32 2147483647, %v106
    %v218 = vand.u32 %v217, 8388607
    %v219 = vor.u32 %v218, 8388608
    %v220 = vsub.s32 0, %v219
    %v221 = vadd.s32 %v216, 1
    %vm222 = vcmp.gt.s32.totalorder %v221, 0
    %v223 = vsel %vm222, %v221, 0
    %v224 = vshrl.u32 %v223, 5
    %v225 = vand.u32 %v223, 31
    %v226 = vsub.s32 32, %v225
    %v227 = vshrl.u32 683565275, %v226
    %v228 = vshll.u32 683565275, %v225
    %v229 = vshrl.u32 2475754826, %v226
    %v230 = vor.u32 %v228, %v229
    %v231 = vshll.u32 2475754826, %v225
    %v232 = vshrl.u32 2131351028, %v226
    %v233 = vor.u32 %v231, %v232
    %v234 = vshll.u32 2131351028, %v225
    %v235 = vshrl.u32 2102212464, %v226
    %v236 = vor.u32 %v234, %v235
    %v237 = vshll.u32 2102212464, %v225
    %v238 = vshrl.u32 920167782, %v226
    %v239 = vor.u32 %v237, %v238
    %v240 = vshll.u32 920167782, %v225
    %v241 = vshrl.u32 1326507024, %v226
    %v242 = vor.u32 %v240, %v241
    %vm243 = vcmp.lt.s32.totalorder %v224, 1
    %vm244 = vcmp.lt.s32.totalorder %v224, 2
    %vm245 = vcmp.lt.s32.totalorder %v224, 3
    %vm246 = vcmp.lt.s32.totalorder %v224, 4
    %v247 = vsel %vm243, %v227, %v230
    %v248 = vsel %vm246, %v236, 2102212464
    %v249 = vsel %vm245, %v233, %v248
    %v250 = vsel %vm244, %v247, %v249
    %v251 = vsel %vm243, %v230, %v233
    %v252 = vsel %vm246, %v239, 920167782
    %v253 = vsel %vm245, %v236, %v252
    %v254 = vsel %vm244, %v251, %v253
    %v255 = vsel %vm243, %v233, %v236
    %v256 = vsel %vm246, %v242, 1326507024
    %v257 = vsel %vm245, %v239, %v256
    %v258 = vsel %vm244, %v255, %v257
    %v259 = vshll.u32 %v219, 8
    %v260 = vmul.u32.u64.compose %v259, %v258
    %v261 = vextract.low.u32 %v260
    %v262 = vextract.high.u32 %v260
    %v263 = vmul.u32.u64.compose %v259, %v254
    %v264 = vextract.low.u32 %v263
    %v265 = vextract.high.u32 %v263
    %v266 = vmul.u32 %v259, %v250
    %v267 = vadd.s32 %v262, %v264
    %vm268 = vc.u32 %v262, %v264
    %v269 = vadd.s32 %v265, 1
    %v270 = vsel %vm268, %v269, %v265
    %v271 = vadd.s32 %v266, %v270
    %v272 = vadd.s32 %v271, 536870912
    %v273 = vshrl.u32 %v272, 30
    %v274 = vshll.u32 %v273, 30
    %v275 = vsub.s32 %v271, %v274
    %vm276 = vcmp.lt.s32.totalorder %v275, 0
    %v277 = vsub.s32 0, %v275
    %v278 = vsel %vm276, %v277, %v275
    %v279 = vclz %v278
    %v280 = vsub.s32 %v279, 2
    %vm281 = vcmp.gt.s32.totalorder 0, %v280
    %v282 = vsel %vm281, 0, %v280
    %v283 = vsub.s32 32, %v282
    %v284 = vshll.u32 %v275, %v282
    %v285 = vshrl.u32 %v267, %v283
    %v286 = vor.u32 %v284, %v285
    %v287 = vsub.s32 4294967266, %v282
    %v288 = vadd.s32 %v287, 127
    %v289 = vshll.u32 %v288, 23
    %v290 = vor.u32 4788187, %v289
    %v291 = vand.u32 2147483647, %v290
    %v293 = vcvt.s32.f32 %v286
    %v294 = vmul.f32 %v293, %v291
    %v295 = vxor.u32 %v294, 2147483648
    %v296 = vsel %vm213, %v295, %v294
    %v297 = vsub.s32 4, %v273
    %v298 = vsel %vm213, %v297, %v273
    %v299 = vsel %vm212, %v106, %v296
    %v300 = vsel %vm212, 0, %v298
    %v301 = vcosq.f32.pop %v299
    %v302 = vsinq.f32.pop %v299
    %vm303 = vweird.f32 %v106
    %v304 = vadd.s32 %v300, 3
    %v305 = vand.u32 %v304, 3
    %vm306 = vcmp.lt.s32.totalorder %v305, 2
    %vm307 = vcmp.eq.s32.totalorder %v305, 0
    %v308 = vxor.u32 %v302, 2147483648
    %v309 = vsel %vm307, %v301, %v308
    %vm310 = vcmp.eq.s32.totalorder %v305, 2
    %v311 = vxor.u32 %v301, 2147483648
    %v312 = vsel %vm310, %v311, %v302
    %v313 = vsel %vm306, %v309, %v312
    %v314 = vsel %vm303, nan, %v313
    %v315 = vadd.f32 %v98, %v314
    %s316 = sld [smem:[#allocation3]]
    %s317 = sld [smem:[#allocation3 + $0x1]]
    %s318 = sld [smem:[#allocation3 + $0x2]]
    %s319 = sld [smem:[#allocation3 + $0x3]]
    %s320 = sld [smem:[#allocation3 + $0x4]]
    %s321 = sld [smem:[#allocation3 + $0x5]]
    %s322 = sld [smem:[#allocation3 + $0x6]]
    %s323 = sld [smem:[#allocation3 + $0x7]]
    %s324 = sld [smem:[#allocation3 + $0x8]]
    %s325 = sld [smem:[#allocation7]]
    %s326 = sld [smem:[#allocation7 + $0x1]]
    %s327 = sld [smem:[#allocation7 + $0x2]]
    %v328 = vstv %s316
    %v329 = vmul.f32 %v328, %v79
    %v330 = vstv %s317
    %v331 = vmul.f32 %v330, %v81
    %v332 = vadd.f32 %v329, %v331
    %v333 = vstv %s318
    %v334 = vmul.f32 %v333, %v83
    %v335 = vadd.f32 %v332, %v334
    %v336 = vstv %s325
    %v337 = vadd.f32 %v335, %v336
    %338 = vst [vmem:[#allocation11] sm:$0xff] %v337
    %s339 = sld [smem:[#allocation9]]
    %v340 = vstv %s339
    %vm341 = vcmp.ge.f32.partialorder %v337, %v340
    %s342 = sld [smem:[#allocation9 + $0x3]]
    %v343 = vstv %s342
    %vm344 = vcmp.le.f32.partialorder %v337, %v343
    %vm345 = vmand %vm341, %vm344
    %v346 = vmul.f32 %v328, %v91
    %v347 = vmul.f32 %v330, %v98
    %v348 = vadd.f32 %v346, %v347
    %v349 = vmul.f32 %v333, %v105
    %v350 = vadd.f32 %v348, %v349
    %v351 = vadd.f32 %v350, %v336
    %v352 = vmul.f32 %v328, %v210
    %v353 = vmul.f32 %v330, %v315
    %v354 = vadd.f32 %v352, %v353
    %v355 = vadd.f32 %v354, %v349
    %v356 = vadd.f32 %v355, %v336
    %v357 = vstv %s319
    %v358 = vmul.f32 %v357, %v79
    %v359 = vstv %s320
    %v360 = vmul.f32 %v359, %v81
    %v361 = vadd.f32 %v358, %v360
    %v362 = vstv %s321
    %v363 = vmul.f32 %v362, %v83
    %v364 = vadd.f32 %v361, %v363
    %v365 = vstv %s326
    %v366 = vadd.f32 %v364, %v365
    %s367 = scalar_lea.vmem [#allocation11], 8
    %368 = vst [vmem:[%s367] sm:$0xff] %v366
    %s369 = sld [smem:[#allocation9 + $0x1]]
    %v370 = vstv %s369
    %vm371 = vcmp.ge.f32.partialorder %v366, %v370
    %s372 = sld [smem:[#allocation9 + $0x4]]
    %v373 = vstv %s372
    %vm374 = vcmp.le.f32.partialorder %v366, %v373
    %vm375 = vmand %vm371, %vm374
    %vm376 = vmand %vm345, %vm375
    %v377 = vmul.f32 %v357, %v91
    %v378 = vmul.f32 %v359, %v98
    %v379 = vadd.f32 %v377, %v378
    %v380 = vmul.f32 %v362, %v105
    %v381 = vadd.f32 %v379, %v380
    %v382 = vadd.f32 %v381, %v365
    %v383 = vmul.f32 %v357, %v210
    %v384 = vmul.f32 %v359, %v315
    %v385 = vadd.f32 %v383, %v384
    %v386 = vadd.f32 %v385, %v380
    %v387 = vadd.f32 %v386, %v365
    %v388 = vstv %s322
    %v389 = vmul.f32 %v388, %v79
    %v390 = vstv %s323
    %v391 = vmul.f32 %v390, %v81
    %v392 = vadd.f32 %v389, %v391
    %v393 = vstv %s324
    %v394 = vmul.f32 %v393, %v83
    %v395 = vadd.f32 %v392, %v394
    %v396 = vstv %s327
    %v397 = vadd.f32 %v395, %v396
    %s398 = scalar_lea.vmem [#allocation11], 16
    %399 = vst [vmem:[%s398] sm:$0xff] %v397
    %s400 = sld [smem:[#allocation9 + $0x2]]
    %v401 = vstv %s400
    %vm402 = vcmp.ge.f32.partialorder %v397, %v401
    %s403 = sld [smem:[#allocation9 + $0x5]]
    %v404 = vstv %s403
    %vm405 = vcmp.le.f32.partialorder %v397, %v404
    %vm406 = vmand %vm402, %vm405
    %vm407 = vmand %vm376, %vm406
    %v408 = vmul.f32 %v388, %v91
    %v409 = vmul.f32 %v390, %v98
    %v410 = vadd.f32 %v408, %v409
    %v411 = vmul.f32 %v393, %v105
    %v412 = vadd.f32 %v410, %v411
    %v413 = vadd.f32 %v412, %v396
    %v414 = vmul.f32 %v388, %v210
    %v415 = vmul.f32 %v390, %v315
    %v416 = vadd.f32 %v414, %v415
    %v417 = vadd.f32 %v416, %v411
    %v418 = vadd.f32 %v417, %v396
    %v420 = vrot.slane %v356, 5
    %v423 = vrot.slane %v387, 4
    %v426 = vrot.slane %v418, 3
    %vm428 = vcmask 1040384
    %v429 = vsel %vm428, %v351, %v382
    %vm430 = vcmask 1041408
    %v431 = vsel %vm430, %v429, %v413
    %vm432 = vcmask 1042432
    %v433 = vsel %vm432, %v431, %v420
    %vm434 = vcmask 1043456
    %v435 = vsel %vm434, %v433, %v423
    %vm436 = vcmask 1044480
    %v437 = vsel %vm436, %v435, %v426
    %438 = vst [vmem:[#allocation12] sm:$0x3f] %v437
    %v439 = vsel %vm407, 1.0, 0.0
    %v440 = vrot.slane %v439, 4
    %v441 = vmax.f32 %v439, %v440
    %v442 = vrot.slane %v441, 2
    %v443 = vmax.f32 %v441, %v442
    %v444 = vrot.slane %v443, 1
    %v445 = vmax.f32 %v443, %v444
    %vm446 = vcmp.gt.f32.partialorder %v445, 0.0
    %v447 = vlaneseq
    %v448 = vand.u32 %v447, 127
    %s449 = smul.u32 0, 128
    %v450 = vstv %s449
    %v451 = vadd.s32 %v448, %v450
    %s452 = sld [smem:[#allocation2]]
    %v453 = vstv %s452
    %vm454 = vcmp.lt.s32.totalorder %v451, %v453
    %vm455 = vmand %vm446, %vm454
    %v456 = vsel %vm455, 1, 0
    %457 = vst [vmem:[#allocation14] sm:$0x1] %v456
    // Predicated region
    $region42: #{tpu_custom_call.1} parent=1 // pred_check
      _
    $region43: #{tpu_custom_call.1} parent=1 // pred_check_branch
      %459 = sbr.rel (0) target = $region45
    $region44: #{tpu_custom_call.1} parent=1 // pred_region
      %s461 = ssub.s32 384, 384
      %462 = vsyncadd [#allocation5], %s461
      %s463 = sshll.u32 [#allocation11], 4
      %s464 = int_to_ptr.vmem [resolvable:$true] %s463
      %469 = dma.vmem_to_hbm [thread:$0]  %s464, 384, %s6, [#allocation5], 128, 128, 8
    $region45: #{tpu_custom_call.1} parent=1 // pred_fallthru
      _
    // Predicated region
    $region46: #{tpu_custom_call.1} parent=1 // pred_check
      _
    $region47: #{tpu_custom_call.1} parent=1 // pred_check_branch
      %471 = sbr.rel (0) target = $region49
    $region48: #{tpu_custom_call.1} parent=1 // pred_region
      %s473 = ssub.s32 128, 128
      %474 = vsyncadd [#allocation13], %s473
      %s476 = sshll.u32 [#allocation12], 4
      %s477 = int_to_ptr.vmem [resolvable:$true] %s476
      %479 = dma.vmem_to_hbm [thread:$0]  %s477, 128, %s7, [#allocation13]
    $region49: #{tpu_custom_call.1} parent=1 // pred_fallthru
      _
    // Predicated region
    $region50: #{tpu_custom_call.1} parent=1 // pred_check
      _
    $region51: #{tpu_custom_call.1} parent=1 // pred_check_branch
      %481 = sbr.rel (0) target = $region53
    $region52: #{tpu_custom_call.1} parent=1 // pred_region
      %s483 = ssub.s32 16, 16
      %484 = vsyncadd [#allocation13], %s483
      %s486 = sshll.u32 [#allocation14], 4
      %s487 = int_to_ptr.vmem [resolvable:$true] %s486
      %489 = dma.vmem_to_hbm [thread:$0]  %s487, 16, %s8, [#allocation13]
    $region53: #{tpu_custom_call.1} parent=1 // pred_fallthru
      _
    // Predicated region
    $region54: #{tpu_custom_call.1} parent=1 // pred_check
      _
    $region55: #{tpu_custom_call.1} parent=1 // pred_check_branch
      %491 = sbr.rel (0) target = $region57
    $region56: #{tpu_custom_call.1} parent=1 // pred_region
      %492 = dma.done [#allocation5], 384
    $region57: #{tpu_custom_call.1} parent=1 // pred_fallthru
      _
    // Predicated region
    $region58: #{tpu_custom_call.1} parent=1 // pred_check
      _
    $region59: #{tpu_custom_call.1} parent=1 // pred_check_branch
      %494 = sbr.rel (0) target = $region61
    $region60: #{tpu_custom_call.1} parent=1 // pred_region
      %495 = dma.done [#allocation13], 128
    $region61: #{tpu_custom_call.1} parent=1 // pred_fallthru
      _
    // Predicated region
    $region62: #{tpu_custom_call.1} parent=1 // pred_check
      _
    $region63: #{tpu_custom_call.1} parent=1 // pred_check_branch
      %497 = sbr.rel (0) target = $region65
    $region64: #{tpu_custom_call.1} parent=1 // pred_region
      %498 = dma.done [#allocation13], 16
    $region65: #{tpu_custom_call.1} parent=1 // pred_fallthru
      _
    %499 = vsyncpa [#allocation4], 1
    %500 = vsyncpa [#allocation5], 1
    %501 = vsyncpa [#allocation13], 1
    %502 = vsyncpa [#allocation6], 1
    %503 = vsyncpa [#allocation8], 1

</llo_original>
